<compile_context>
chip_gen: v5e
topology: v5e:2x2
jax: 0.10.0
libtpu: 0.0.40
codegen_flags: <defaults>
</compile_context>

<pallas_src>
import functools

import jax
import jax.numpy as jnp
from jax.experimental import pallas as pl
from jax.experimental.pallas import tpu as pltpu


def _round_up(x, m):
    return (x + m - 1) // m * m


def _vmem_capacity_bytes():
    try:
        return int(pltpu.get_tpu_info().vmem_capacity_bytes)
    except Exception:
        return 128 * 1024 * 1024  # v5e/v6e physical VMEM


# ----------------------------------------------------------------------------
# VMEM sizing models (bytes), used to pick the path and the row tile.
# ----------------------------------------------------------------------------
def _fused_bytes(np_, fin, hid, fout):
    adj = np_ * np_ * (1 + 2)                      # int8 input + in-kernel bf16 copy
    x = np_ * fin * 2
    dinv = np_ * 4
    w = (2 * fin * hid + 2 * hid * fout) * 2 + (hid + fout) * 4
    out = np_ * fout * 4
    tmp = np_ * (fin * 6 + hid * 12 + fout * 4)    # aggs, h (f32+bf16), cat, out
    return int((adj + x + dinv + w + out + tmp) * 1.15)


def _tiled_step_bytes(tm, np_, fin, fout, out_itemsize):
    adj_dma = 2 * tm * np_                          # int8 row block, double-buffered
    adj_cast = tm * np_ * 2                         # in-kernel bf16 copy for the MXU
    xblk = 2 * tm * fin * 2
    xres = 2 * np_ * fin * 2                        # resident X (count 2x, conservative)
    dinv = 2 * tm * 4
    w = 2 * 2 * fin * fout * 2
    b = 2 * fout * 4
    outb = 2 * tm * fout * out_itemsize
    tmp = tm * (fin * 6 + 2 * fin * 2 + fout * 8)   # agg f32/bf16, cat, out f32
    return int((adj_dma + adj_cast + xblk + xres + dinv + w + b + outb + tmp) * 1.1)


def _pick_tm(n, fin, hid, fout, budget, max_tm):
    """Largest row tile whose per-step footprint fits the VMEM budget."""
    n8 = _round_up(max(n, 8), 8)
    cands = [t for t in (1024, 512, 256, 128, 64, 32)
             if t <= n8 and (max_tm is None or t <= max_tm)]
    for tm in cands:
        np_c = _round_up(n, tm)
        need = max(_tiled_step_bytes(tm, np_c, fin, hid, 2),
                   _tiled_step_bytes(tm, np_c, hid, fout, 4))
        if need <= budget:
            return tm
    # Tiny graph (grid collapses to one full block) or nothing fits: use the
    # smallest tile.  TODO(synk): K-tile the adjacency columns (v7x) so VMEM
    # use is independent of N instead of shrinking tm here.
    return n8 if n8 < 32 else 32


# ----------------------------------------------------------------------------
# Shared projection: [x_self | deg_inv*agg] @ [W_self; W_neigh] + b
# Single K=2*fin matmul when fin is lane-aligned (fills the 256-deep MXU on
# v6e/v7x for the hidden layer); otherwise two dots on static weight slices.
# ----------------------------------------------------------------------------
def _project(x_self, agg_bf16, w_ref, fin):
    if fin % 128 == 0:
        cat = jnp.concatenate([x_self, agg_bf16], axis=-1)
        return jnp.dot(cat, w_ref[...], preferred_element_type=jnp.float32)
    return (jnp.dot(x_self, w_ref[0:fin, :], preferred_element_type=jnp.float32)
            + jnp.dot(agg_bf16, w_ref[fin:2 * fin, :],
                      preferred_element_type=jnp.float32))


# ----------------------------------------------------------------------------
# Kernel 1: fully fused two-layer forward (whole padded graph resident).
# ----------------------------------------------------------------------------
def _fused_forward_kernel(adj_ref, x_ref, dinv_ref, w1_ref, b1_ref,
                          w2_ref, b2_ref, o_ref, *, fin, hid):
    adj = adj_ref[...].astype(jnp.bfloat16)       # int8 0/1 counts -> bf16 (exact)
    dinv = dinv_ref[...]                          # (Np, 1) f32 row scale
    x = x_ref[...]                                # (Np, fin) bf16

    # ---- layer 1 -------------------------------------------------------------
    agg1 = jnp.dot(adj, x, preferred_element_type=jnp.float32)
    agg1 = (agg1 * dinv).astype(jnp.bfloat16)     # exact f32 mean, then bf16
    h = _project(x, agg1, w1_ref, fin) + b1_ref[...]
    h = jnp.maximum(h, 0.0)
    hb = h.astype(jnp.bfloat16)                   # dropout (inference) => identity

    # ---- layer 2 (output dim pre-padded to 128 -> lane-dense store) ----------
    agg2 = jnp.dot(adj, hb, preferred_element_type=jnp.float32)
    agg2 = (agg2 * dinv).astype(jnp.bfloat16)
    o_ref[...] = _project(hb, agg2, w2_ref, hid) + b2_ref[...]


def _fused_forward(adj, x, deg_inv, w1cat, b1, w2cat, b2, *, fin, hid,
                   vmem_limit):
    np_ = adj.shape[0]
    fout = w2cat.shape[1]
    kernel = functools.partial(_fused_forward_kernel, fin=fin, hid=hid)
    return pl.pallas_call(
        kernel,
        out_shape=jax.ShapeDtypeStruct((np_, fout), jnp.float32),
        in_specs=[
            pl.BlockSpec((np_, np_), lambda: (0, 0)),      # adjacency (int8)
            pl.BlockSpec((np_, fin), lambda: (0, 0)),      # features (bf16)
            pl.BlockSpec((np_, 1), lambda: (0, 0)),        # 1/deg (f32)
            pl.BlockSpec((2 * fin, hid), lambda: (0, 0)),  # [W1_self; W1_neigh]
            pl.BlockSpec((1, hid), lambda: (0, 0)),
            pl.BlockSpec((2 * hid, fout), lambda: (0, 0)),  # [W2_self; W2_neigh]
            pl.BlockSpec((1, fout), lambda: (0, 0)),
        ],
        out_specs=pl.BlockSpec((np_, fout), lambda: (0, 0)),
        compiler_params=pltpu.CompilerParams(vmem_limit_bytes=vmem_limit),
    )(adj, x, deg_inv, w1cat, b1, w2cat, b2)


# ----------------------------------------------------------------------------
# Kernel 2: one SAGEConv layer, row-tiled over the adjacency (scalable path).
#   out[blk i] = [X[blk i] | dinv[blk i]*(A01[blk i,:] @ X_all)] @ Wcat + b
# Weights / bias / full feature matrix stay VMEM-resident across grid steps;
# only the (tm, N) int8 adjacency row block, the (tm, fin) self block, the
# (tm, 1) 1/deg block and the (tm, fout) output block are streamed.
# ----------------------------------------------------------------------------
def _sage_layer_tiled_kernel(adj_ref, xblk_ref, xall_ref, dinv_ref, w_ref,
                             b_ref, o_ref, *, fin, apply_relu):
    adj = adj_ref[...].astype(jnp.bfloat16)        # (tm, Np) 0/1 counts
    agg = jnp.dot(adj, xall_ref[...], preferred_element_type=jnp.float32)
    agg = (agg * dinv_ref[...]).astype(jnp.bfloat16)
    out = _project(xblk_ref[...], agg, w_ref, fin) + b_ref[...]
    if apply_relu:
        out = jnp.maximum(out, 0.0)
    o_ref[...] = out.astype(o_ref.dtype)           # bf16 store for the hidden layer


def _sage_layer_tiled(adj, x, deg_inv, w_cat, b, *, tm, fin, fout, out_dtype,
                      apply_relu, vmem_limit):
    np_ = adj.shape[0]
    kernel = functools.partial(_sage_layer_tiled_kernel, fin=fin,
                               apply_relu=apply_relu)
    # NOTE: if profiling shows exposed DMA on the adjacency stream for very
    # large tm, bump that one BlockSpec with pipeline_mode=pl.Buffered(3).
    return pl.pallas_call(
        kernel,
        out_shape=jax.ShapeDtypeStruct((np_, fout), out_dtype),
        grid=(np_ // tm,),
        in_specs=[
            pl.BlockSpec((tm, np_), lambda i: (i, 0)),      # adjacency row block
            pl.BlockSpec((tm, fin), lambda i: (i, 0)),      # this block's features
            pl.BlockSpec((np_, fin), lambda i: (0, 0)),     # all features (resident)
            pl.BlockSpec((tm, 1), lambda i: (i, 0)),        # 1/deg rows
            pl.BlockSpec((2 * fin, fout), lambda i: (0, 0)),
            pl.BlockSpec((1, fout), lambda i: (0, 0)),
        ],
        out_specs=pl.BlockSpec((tm, fout), lambda i: (i, 0)),
        compiler_params=pltpu.CompilerParams(
            dimension_semantics=("parallel",),
            vmem_limit_bytes=vmem_limit),
    )(adj, x, x, deg_inv, w_cat, b)


# ----------------------------------------------------------------------------
# Glue: adjacency construction, parameter init, full forward
# ----------------------------------------------------------------------------
def init_params(key, embedding_dimension=16, hidden_dimension=128, out_dim=3):
    ks = jax.random.split(key, 6)

    def glorot(k, shape):
        fan_in, fan_out = shape
        limit = jnp.sqrt(6.0 / (fan_in + fan_out))
        return jax.random.uniform(k, shape, jnp.float32, -limit, limit)

    return {
        "sage1": {
            "w_self": glorot(ks[0], (embedding_dimension, hidden_dimension)),
            "w_neigh": glorot(ks[1], (embedding_dimension, hidden_dimension)),
            "b": jnp.zeros((hidden_dimension,), jnp.float32),
        },
        "sage2": {
            "w_self": glorot(ks[2], (hidden_dimension, out_dim)),
            "w_neigh": glorot(ks[3], (hidden_dimension, out_dim)),
            "b": jnp.zeros((out_dim,), jnp.float32),
        },
    }


def _pad2(a, rows, cols):
    return jnp.pad(a, ((0, rows - a.shape[0]), (0, cols - a.shape[1])))


def smote_sage_forward(params, feature, edge_index, edge_type=None,
                       dropout=0.3, training=False, force_tiled=False,
                       max_tm=None):
    """SMOTESAGE.forward: relu(sage1(x)) -> dropout -> sage2(x)."""
    del edge_type, dropout  # edge_type unused in the reference forward
    n, fin_raw = feature.shape
    hid_raw = params["sage1"]["w_self"].shape[1]
    out_raw = params["sage2"]["w_self"].shape[1]

    # Padded dims: fin to bf16-tile-friendly 16, hid/out to lane-dense 128.
    fin = _round_up(max(fin_raw, 1), 16)
    hid = _round_up(hid_raw, 128)
    fout = _round_up(out_raw, 128)

    cap = _vmem_capacity_bytes()          # 128 MiB on v5e/v6e, 64 MiB on v7x
    budget = int(cap * 0.70)              # sizing budget (headroom for compiler)
    vmem_limit = int(cap * 0.80)          # scoped-VMEM override for Mosaic

    # Path selection from the actual VMEM footprint, not a fixed threshold.
    np_fused = _round_up(max(n, 8), 8)
    use_fused = (not force_tiled) and _fused_bytes(np_fused, fin, hid, fout) <= budget
    if use_fused:
        tm, np_ = None, np_fused
    else:
        tm = _pick_tm(n, fin, hid, fout, budget, max_tm)
        np_ = _round_up(max(n, tm), tm)

    # 0/1 edge-count adjacency in int8 (half the HBM bytes of bf16) and an
    # exact f32 1/deg vector; the row normalization happens in the kernel's
    # f32 epilogue.  No N^2 f32 intermediate is materialized on the host side.
    src, dst = edge_index[0], edge_index[1]
    adj = jnp.zeros((np_, np_), jnp.int8).at[dst, src].add(jnp.int8(1))
    deg = jnp.zeros((np_,), jnp.float32).at[dst].add(1.0)
    deg_inv = (1.0 / jnp.maximum(deg, 1.0)).reshape(np_, 1)
    x = jnp.pad(feature, ((0, np_ - n), (0, fin - fin_raw))).astype(jnp.bfloat16)

    # Concatenated [W_self; W_neigh] per layer (single K=2*fin MXU pass when
    # fin is lane-aligned), bf16 operands, f32 biases.
    w1cat = jnp.concatenate(
        [_pad2(params["sage1"]["w_self"], fin, hid),
         _pad2(params["sage1"]["w_neigh"], fin, hid)], axis=0).astype(jnp.bfloat16)
    b1 = jnp.pad(params["sage1"]["b"], (0, hid - hid_raw)).reshape(1, hid)
    b1 = b1.astype(jnp.float32)
    w2cat = jnp.concatenate(
        [_pad2(params["sage2"]["w_self"], hid, fout),
         _pad2(params["sage2"]["w_neigh"], hid, fout)], axis=0).astype(jnp.bfloat16)
    b2 = jnp.pad(params["sage2"]["b"], (0, fout - out_raw)).reshape(1, fout)
    b2 = b2.astype(jnp.float32)

    if training:
        # TODO(synk): training-mode dropout mask via pltpu.prng_random_bits.
        pass

    if tm is None:
        out = _fused_forward(adj, x, deg_inv, w1cat, b1, w2cat, b2,
                             fin=fin, hid=hid, vmem_limit=vmem_limit)
    else:
        h = _sage_layer_tiled(adj, x, deg_inv, w1cat, b1, tm=tm, fin=fin,
                              fout=hid, out_dtype=jnp.bfloat16,
                              apply_relu=True, vmem_limit=vmem_limit)
        out = _sage_layer_tiled(adj, h, deg_inv, w2cat, b2, tm=tm, fin=hid,
                                fout=fout, out_dtype=jnp.float32,
                                apply_relu=False, vmem_limit=vmem_limit)

    return out[:n, :out_raw]


# ----------------------------------------------------------------------------
# Pure-JAX reference mirroring the kernel numerics
# (0/1 bf16 adjacency, f32 1/deg scaling, bf16 operands, f32 accumulation)
# ----------------------------------------------------------------------------
def reference_forward(params, feature, edge_index):
    n = feature.shape[0]
    src, dst = edge_index[0], edge_index[1]
    adj = jnp.zeros((n, n), jnp.float32).at[dst, src].add(1.0)
    deg_inv = 1.0 / jnp.maximum(adj.sum(axis=1, keepdims=True), 1.0)
    adj = adj.astype(jnp.bfloat16)
    x = feature.astype(jnp.bfloat16)

    def layer(xb, ws, wn, b, relu):
        agg = jnp.dot(adj, xb, preferred_element_type=jnp.float32)
        agg = (agg * deg_inv).astype(jnp.bfloat16)
        out = (jnp.dot(xb, ws.astype(jnp.bfloat16),
                       preferred_element_type=jnp.float32)
               + jnp.dot(agg, wn.astype(jnp.bfloat16),
                         preferred_element_type=jnp.float32)
               + b)
        return jnp.maximum(out, 0.0) if relu else out

    h = layer(x, params["sage1"]["w_self"], params["sage1"]["w_neigh"],
              params["sage1"]["b"], True)
    return layer(h.astype(jnp.bfloat16), params["sage2"]["w_self"],
                 params["sage2"]["w_neigh"], params["sage2"]["b"], False)


if __name__ == "__main__":
    key = jax.random.PRNGKey(0)
    k_param, k_feat, k_src, k_dst, k_type = jax.random.split(key, 5)

    num_nodes = 16
    num_edges = 40
    embedding_dimension = 16
    hidden_dimension = 128
    out_dim = 3

    params = init_params(k_param, embedding_dimension, hidden_dimension, out_dim)

    feature = jax.random.normal(k_feat, (num_nodes, embedding_dimension),
                                jnp.float32)
    edge_index = jnp.stack([
        jax.random.randint(k_src, (num_edges,), 0, num_nodes),
        jax.random.randint(k_dst, (num_edges,), 0, num_nodes),
    ], axis=0)
    edge_type = jax.random.randint(k_type, (num_edges,), 0, 2)

    ref = reference_forward(params, feature, edge_index)

    # --- path 1: fused single-kernel forward (demo size fits VMEM) -----------
    out = smote_sage_forward(params, feature, edge_index, edge_type)
    out = jax.block_until_ready(out)
    assert out.shape == (num_nodes, out_dim), out.shape
    assert out.dtype == jnp.float32, out.dtype
    assert jnp.allclose(out, ref, atol=1e-2, rtol=1e-2), \
        float(jnp.max(jnp.abs(out - ref)))

    # --- path 2: row-tiled per-layer kernels (forced) on the same graph ------
    out_t = smote_sage_forward(params, feature, edge_index, edge_type,
                               force_tiled=True)
    out_t = jax.block_until_ready(out_t)
    assert jnp.allclose(out_t, ref, atol=1e-2, rtol=1e-2)

    # --- path 2 on a larger graph with a real multi-block grid ---------------
    n2, e2 = 256, 1024
    k_f2, k_s2, k_d2 = jax.random.split(jax.random.PRNGKey(1), 3)
    feat2 = jax.random.normal(k_f2, (n2, embedding_dimension), jnp.float32)
    ei2 = jnp.stack([jax.random.randint(k_s2, (e2,), 0, n2),
                     jax.random.randint(k_d2, (e2,), 0, n2)], axis=0)
    out2 = smote_sage_forward(params, feat2, ei2, None, force_tiled=True,
                              max_tm=64)
    out2 = jax.block_until_ready(out2)
    assert out2.shape == (n2, out_dim)
    ref2 = reference_forward(params, feat2, ei2)
    assert jnp.allclose(out2, ref2, atol=1e-2, rtol=1e-2), \
        float(jnp.max(jnp.abs(out2 - ref2)))

    print("KERNEL_OK")
</pallas_src>

<mosaic_0001>
module attributes {stable_mosaic.version = 11 : i64} {
  func.func @_fused_forward_kernel(%arg0: memref<16x16xi8, #tpu.memory_space<vmem>>, %arg1: memref<16x16xbf16, #tpu.memory_space<vmem>>, %arg2: memref<16x1xf32, #tpu.memory_space<vmem>>, %arg3: memref<32x128xbf16, #tpu.memory_space<vmem>>, %arg4: memref<1x128xf32, #tpu.memory_space<vmem>>, %arg5: memref<256x128xbf16, #tpu.memory_space<vmem>>, %arg6: memref<1x128xf32, #tpu.memory_space<vmem>>, %arg7: memref<16x128xf32, #tpu.memory_space<vmem>>) attributes {dimension_semantics = [], scalar_prefetch = 0 : i64, scratch_operands = 0 : i64, tpu.core_type = #tpu.core_type<tc>} {
    %c0 = arith.constant 0 : index
    %c0_0 = arith.constant 0 : index
    %0 = vector.load %arg0[%c0, %c0_0] : memref<16x16xi8, #tpu.memory_space<vmem>>, vector<16x16xi8>
    %1 = arith.sitofp %0 : vector<16x16xi8> to vector<16x16xbf16>
    %c0_1 = arith.constant 0 : index
    %c0_2 = arith.constant 0 : index
    %2 = vector.load %arg2[%c0_1, %c0_2] : memref<16x1xf32, #tpu.memory_space<vmem>>, vector<16x1xf32>
    %c0_3 = arith.constant 0 : index
    %c0_4 = arith.constant 0 : index
    %3 = vector.load %arg1[%c0_3, %c0_4] : memref<16x16xbf16, #tpu.memory_space<vmem>>, vector<16x16xbf16>
    %cst = arith.constant dense<0.000000e+00> : vector<16x16xf32>
    %4 = tpu.matmul %1, %3, %cst {dimension_numbers = #tpu.dot_dimension_numbers<[1], [0], [0], [1], [0, 0, 1, 1], [], []>} : vector<16x16xbf16>, vector<16x16xbf16>, vector<16x16xf32> -> vector<16x16xf32>
    %5 = vector.broadcast %2 : vector<16x1xf32> to vector<16x16xf32>
    %6 = arith.mulf %4, %5 : vector<16x16xf32>
    %7 = arith.truncf %6 : vector<16x16xf32> to vector<16x16xbf16>
    %c0_5 = arith.constant 0 : index
    %c0_6 = arith.constant 0 : index
    %8 = vector.load %arg3[%c0_5, %c0_6] : memref<32x128xbf16, #tpu.memory_space<vmem>>, vector<16x128xbf16>
    %cst_7 = arith.constant dense<0.000000e+00> : vector<16x128xf32>
    %9 = tpu.matmul %3, %8, %cst_7 {dimension_numbers = #tpu.dot_dimension_numbers<[1], [0], [0], [1], [0, 0, 1, 1], [], []>} : vector<16x16xbf16>, vector<16x128xbf16>, vector<16x128xf32> -> vector<16x128xf32>
    %c16 = arith.constant 16 : index
    %c0_8 = arith.constant 0 : index
    %10 = vector.load %arg3[%c16, %c0_8] : memref<32x128xbf16, #tpu.memory_space<vmem>>, vector<16x128xbf16>
    %cst_9 = arith.constant dense<0.000000e+00> : vector<16x128xf32>
    %11 = tpu.matmul %7, %10, %cst_9 {dimension_numbers = #tpu.dot_dimension_numbers<[1], [0], [0], [1], [0, 0, 1, 1], [], []>} : vector<16x16xbf16>, vector<16x128xbf16>, vector<16x128xf32> -> vector<16x128xf32>
    %12 = arith.addf %9, %11 : vector<16x128xf32>
    %c0_10 = arith.constant 0 : index
    %c0_11 = arith.constant 0 : index
    %13 = vector.load %arg4[%c0_10, %c0_11] : memref<1x128xf32, #tpu.memory_space<vmem>>, vector<1x128xf32>
    %14 = vector.broadcast %13 : vector<1x128xf32> to vector<16x128xf32>
    %15 = arith.addf %12, %14 : vector<16x128xf32>
    %cst_12 = arith.constant 0.000000e+00 : f32
    %16 = vector.broadcast %cst_12 : f32 to vector<16x128xf32>
    %17 = arith.maximumf %15, %16 : vector<16x128xf32>
    %18 = arith.truncf %17 : vector<16x128xf32> to vector<16x128xbf16>
    %cst_13 = arith.constant dense<0.000000e+00> : vector<16x128xf32>
    %19 = tpu.matmul %1, %18, %cst_13 {dimension_numbers = #tpu.dot_dimension_numbers<[1], [0], [0], [1], [0, 0, 1, 1], [], []>} : vector<16x16xbf16>, vector<16x128xbf16>, vector<16x128xf32> -> vector<16x128xf32>
    %20 = vector.broadcast %2 : vector<16x1xf32> to vector<16x128xf32>
    %21 = arith.mulf %19, %20 : vector<16x128xf32>
    %22 = arith.truncf %21 : vector<16x128xf32> to vector<16x128xbf16>
    %23 = tpu.concatenate %18, %22 in 1 : vector<16x128xbf16>, vector<16x128xbf16> -> vector<16x256xbf16>
    %c0_14 = arith.constant 0 : index
    %c0_15 = arith.constant 0 : index
    %24 = vector.load %arg5[%c0_14, %c0_15] : memref<256x128xbf16, #tpu.memory_space<vmem>>, vector<256x128xbf16>
    %cst_16 = arith.constant dense<0.000000e+00> : vector<16x128xf32>
    %25 = tpu.matmul %23, %24, %cst_16 {dimension_numbers = #tpu.dot_dimension_numbers<[1], [0], [0], [1], [0, 0, 1, 1], [], []>} : vector<16x256xbf16>, vector<256x128xbf16>, vector<16x128xf32> -> vector<16x128xf32>
    %c0_17 = arith.constant 0 : index
    %c0_18 = arith.constant 0 : index
    %26 = vector.load %arg6[%c0_17, %c0_18] : memref<1x128xf32, #tpu.memory_space<vmem>>, vector<1x128xf32>
    %27 = vector.broadcast %26 : vector<1x128xf32> to vector<16x128xf32>
    %28 = arith.addf %25, %27 : vector<16x128xf32>
    %c0_19 = arith.constant 0 : index
    %c0_20 = arith.constant 0 : index
    %29 = vector.load %arg7[%c0_19, %c0_20] : memref<16x128xf32, #tpu.memory_space<vmem>>, vector<16x128xf32>
    tpu.vector_store %arg7[%c0_19, %c0_20], %28 {strides = array<i32>} : memref<16x128xf32, #tpu.memory_space<vmem>>, vector<16x128xf32>,
    return
  }
}

</mosaic_0001>

<llo_original>
// kernel: tpu_custom_call.1
$region0: #{tpu_custom_call.1}
  #allocation0 [shape = 'u32[]', space=smem, size = 0x4, offset = 0x4, fixed_abs, tag = 'smem constant byte address 0x4 - core index']
  #allocation1 [shape = 'u32[72,128]{1,0:T(1,128)}', space=vmem, size = 0x9000, scoped, tag = 'internal scratch']
  %s0 = inlined_call_operand.hbm [shape: s8[16,16], index: 0, kind: input, shape index: {}]
  %s1 = inlined_call_operand.hbm [shape: bf16[16,16], index: 1, kind: input, shape index: {}]
  %s2 = inlined_call_operand.vmem [shape: f32[16,1], index: 2, kind: input, shape index: {}]
  %s3 = inlined_call_operand.vmem [shape: bf16[32,128], index: 3, kind: input, shape index: {}]
  %s4 = inlined_call_operand.vmem [shape: f32[1,128], index: 4, kind: input, shape index: {}]
  %s5 = inlined_call_operand.hbm [shape: bf16[256,128], index: 5, kind: input, shape index: {}]
  %s6 = inlined_call_operand.vmem [shape: f32[1,128], index: 6, kind: input, shape index: {}]
  %s7 = inlined_call_operand.hbm [shape: f32[16,128], index: 7, kind: output, shape index: {}]
  %s8 = sld [smem:[#allocation0]]
  $region50: #{tpu_custom_call.1} parent=0
    _
  %s10 = ssub.s32 1, %s8
  %s11 = scalar_select 0, %s10, %s8
  $region1: #{tpu_custom_call.1} parent=0
    #allocation2 [shape = 'u8[2048]{0}', space=vmem, size = 0x800, scoped, tag = 'input window, operand 0, single buffered']
    #allocation3 [shape = 's32[1]{0}', space=sflag, size = 0x4, scoped, tag = 'scoped memory for tpu_custom_call.1']
    #allocation4 [shape = 's32[1]{0}', space=sflag, size = 0x4, scoped, tag = 'scoped memory for tpu_custom_call.1']
    #allocation5 [shape = 'u8[4096]{0}', space=vmem, size = 0x1000, scoped, tag = 'input window, operand 1, single buffered']
    #allocation6 [shape = 's32[1]{0}', space=sflag, size = 0x4, scoped, tag = 'scoped memory for tpu_custom_call.1']
    #allocation7 [shape = 'u8[65536]{0}', space=vmem, size = 0x10000, scoped, tag = 'input window, operand 5, single buffered']
    #allocation8 [shape = 'u8[8192]{0}', space=vmem, size = 0x2000, scoped, tag = 'output window, operand 0, single buffered']
    %12 = vsyncpa [#allocation3], 0
    %13 = vsyncpa [#allocation6], 0
    %14 = vsyncpa [#allocation4], 0
    // Predicated region
    $region2: #{tpu_custom_call.1} parent=1 // pred_check
      _
    $region3: #{tpu_custom_call.1} parent=1 // pred_check_branch
      %16 = sbr.rel (0) target = $region5
    $region4: #{tpu_custom_call.1} parent=1 // pred_region
      %18 = vsyncadd [#allocation3], 0
      %s19 = sshll.u32 %s0, 4
      %s20 = int_to_ptr.hbm [resolvable:$true] %s19
      %s21 = sshll.u32 [#allocation2], 4
      %s22 = int_to_ptr.vmem [resolvable:$true] %s21
      %27 = dma.hbm_to_vmem [thread:$0]  %s20, 64, %s22, [#allocation3], 32, 32, 2
    $region5: #{tpu_custom_call.1} parent=1 // pred_fallthru
      _
    // Predicated region
    $region6: #{tpu_custom_call.1} parent=1 // pred_check
      _
    $region7: #{tpu_custom_call.1} parent=1 // pred_check_branch
      %29 = sbr.rel (0) target = $region9
    $region8: #{tpu_custom_call.1} parent=1 // pred_region
      %31 = vsyncadd [#allocation6], 0
      %s32 = sshll.u32 %s1, 4
      %s33 = int_to_ptr.hbm [resolvable:$true] %s32
      %s34 = sshll.u32 [#allocation5], 4
      %s35 = int_to_ptr.vmem [resolvable:$true] %s34
      %40 = dma.hbm_to_vmem [thread:$0]  %s33, 128, %s35, [#allocation6], 64, 64, 4
    $region9: #{tpu_custom_call.1} parent=1 // pred_fallthru
      _
    // Predicated region
    $region10: #{tpu_custom_call.1} parent=1 // pred_check
      _
    $region11: #{tpu_custom_call.1} parent=1 // pred_check_branch
      %42 = sbr.rel (0) target = $region13
    $region12: #{tpu_custom_call.1} parent=1 // pred_region
      _
    $region13: #{tpu_custom_call.1} parent=1 // pred_fallthru
      _
    // Predicated region
    $region14: #{tpu_custom_call.1} parent=1 // pred_check
      _
    $region15: #{tpu_custom_call.1} parent=1 // pred_check_branch
      %44 = sbr.rel (0) target = $region17
    $region16: #{tpu_custom_call.1} parent=1 // pred_region
      _
    $region17: #{tpu_custom_call.1} parent=1 // pred_fallthru
      _
    // Predicated region
    $region18: #{tpu_custom_call.1} parent=1 // pred_check
      _
    $region19: #{tpu_custom_call.1} parent=1 // pred_check_branch
      %46 = sbr.rel (0) target = $region21
    $region20: #{tpu_custom_call.1} parent=1 // pred_region
      _
    $region21: #{tpu_custom_call.1} parent=1 // pred_fallthru
      _
    // Predicated region
    $region22: #{tpu_custom_call.1} parent=1 // pred_check
      _
    $region23: #{tpu_custom_call.1} parent=1 // pred_check_branch
      %48 = sbr.rel (0) target = $region25
    $region24: #{tpu_custom_call.1} parent=1 // pred_region
      %50 = vsyncadd [#allocation6], 0
      %s51 = sshll.u32 %s5, 4
      %s52 = int_to_ptr.hbm [resolvable:$true] %s51
      %s53 = sshll.u32 [#allocation7], 4
      %s54 = int_to_ptr.vmem [resolvable:$true] %s53
      %59 = dma.hbm_to_vmem [thread:$0]  %s52, 2048, %s54, [#allocation6], 64, 64, 4
    $region25: #{tpu_custom_call.1} parent=1 // pred_fallthru
      _
    // Predicated region
    $region26: #{tpu_custom_call.1} parent=1 // pred_check
      _
    $region27: #{tpu_custom_call.1} parent=1 // pred_check_branch
      %61 = sbr.rel (0) target = $region29
    $region28: #{tpu_custom_call.1} parent=1 // pred_region
      _
    $region29: #{tpu_custom_call.1} parent=1 // pred_fallthru
      _
    // Predicated region
    $region30: #{tpu_custom_call.1} parent=1 // pred_check
      _
    $region31: #{tpu_custom_call.1} parent=1 // pred_check_branch
      %63 = sbr.rel (0) target = $region33
    $region32: #{tpu_custom_call.1} parent=1 // pred_region
      %65 = dma.done [#allocation3], 64
    $region33: #{tpu_custom_call.1} parent=1 // pred_fallthru
      _
    // Predicated region
    $region34: #{tpu_custom_call.1} parent=1 // pred_check
      _
    $region35: #{tpu_custom_call.1} parent=1 // pred_check_branch
      %67 = sbr.rel (0) target = $region37
    $region36: #{tpu_custom_call.1} parent=1 // pred_region
      %69 = dma.done [#allocation6], 128
    $region37: #{tpu_custom_call.1} parent=1 // pred_fallthru
      _
    // Predicated region
    $region38: #{tpu_custom_call.1} parent=1 // pred_check
      _
    $region39: #{tpu_custom_call.1} parent=1 // pred_check_branch
      %71 = sbr.rel (0) target = $region41
    $region40: #{tpu_custom_call.1} parent=1 // pred_region
      %73 = dma.done [#allocation6], 2048
    $region41: #{tpu_custom_call.1} parent=1 // pred_fallthru
      _
    %v75 = vld [vmem:[#allocation2] sm:$0x3]
    %v76 = vld [vmem:[#allocation2 + $0x2] sm:$0x3]
    %v77 = vunpack.c.0.s8 %v75
    %v78 = vunpack.c.0.s8 %v76
    %v79 = vcvt.s32.f32 %v77
    %v80 = vcvt.s32.f32 %v78
    %v81 = vpack.c.bf16 %v80, %v79
    %v82 = vld [vmem:[%s2] sm:$0xff]
    %v83 = vld [vmem:[%s2 + $0x8] sm:$0xff]
    %v84 = vld [vmem:[#allocation5] sm:$0xf]
    %v85 = vld [vmem:[#allocation5 + $0x4] sm:$0xf]
    %v88 = vunpack.c.l.b16 %v84
    %v89 = vunpack.c.l.b16 %v85
    %v90 = vpack.c.b16 %v89, %v88
    %vm92 = vcmask 130048
    %v94 = vsel %vm92, %v81, 0
    %96 = vmatpush.bf16.msra.mxu0 0
    %97 = vmatpush.bf16.msra.mxu0 0
    %98 = vmatpush.bf16.msra.mxu0 0
    %99 = vmatpush.bf16.msra.mxu0 0
    %100 = vmatpush.bf16.msra.mxu0 0
    %101 = vmatpush.bf16.msra.mxu0 0
    %102 = vmatpush.bf16.msra.mxu0 0
    %103 = vmatpush.bf16.msra.mxu0 %v90
    %104 = vmatmul.bf16.gmra.mxu0 %v94
    %v105 = vpop.f32.mrf.mxu0
    %v106 = vadd.f32 0.0, %v105
    %v107 = vpop.f32.mrf.mxu0
    %v108 = vadd.f32 0.0, %v107
    %109 = vdwg.mxu0
    %111 = vset.pattern.permute.xlu0 0
    %112 = vperm.xlu0 %111, %v82
    %v113 = vpop.permute.xlu0 %112
    %116 = vset.pattern.permute.xlu0 0
    %117 = vperm.xlu0 %116, %v83
    %v118 = vpop.permute.xlu0 %117
    %v120 = vmul.f32 %v106, %v113
    %v121 = vmul.f32 %v108, %v118
    %v122 = vpack.c.bf16 %v121, %v120
    %v123 = vld [vmem:[%s3] sm:$0xf]
    %v124 = vld [vmem:[%s3 + $0x4] sm:$0xf]
    %v125 = vld [vmem:[%s3 + $0x8] sm:$0xf]
    %v126 = vld [vmem:[%s3 + $0xc] sm:$0xf]
    %v129 = vunpack.c.l.b16 %v125
    %v130 = vunpack.c.l.b16 %v126
    %v131 = vpack.c.b16 %v130, %v129
    %v134 = vsel %vm92, %v122, 0
    %136 = vmatpush.bf16.msra.mxu0 0
    %137 = vmatpush.bf16.msra.mxu0 0
    %138 = vmatpush.bf16.msra.mxu0 0
    %139 = vmatpush.bf16.msra.mxu0 0
    %140 = vmatpush.bf16.msra.mxu0 0
    %141 = vmatpush.bf16.msra.mxu0 0
    %142 = vmatpush.bf16.msra.mxu0 0
    %143 = vmatpush.bf16.msra.mxu0 %v131
    %144 = vmatmul.bf16.gmra.mxu0 %v134
    %v145 = vpop.f32.mrf.mxu0
    %v146 = vadd.f32 0.0, %v145
    %v147 = vpop.f32.mrf.mxu0
    %v148 = vadd.f32 0.0, %v147
    %149 = vdwg.mxu0
    %v152 = vunpack.c.l.b16 %v123
    %v153 = vunpack.c.l.b16 %v124
    %v154 = vpack.c.b16 %v153, %v152
    %v157 = vsel %vm92, %v90, 0
    %159 = vmatpush.bf16.msra.mxu0 0
    %160 = vmatpush.bf16.msra.mxu0 0
    %161 = vmatpush.bf16.msra.mxu0 0
    %162 = vmatpush.bf16.msra.mxu0 0
    %163 = vmatpush.bf16.msra.mxu0 0
    %164 = vmatpush.bf16.msra.mxu0 0
    %165 = vmatpush.bf16.msra.mxu0 0
    %166 = vmatpush.bf16.msra.mxu0 %v154
    %167 = vmatmul.bf16.gmra.mxu0 %v157
    %v168 = vpop.f32.mrf.mxu0
    %v169 = vadd.f32 %v146, %v168
    %v170 = vpop.f32.mrf.mxu0
    %v171 = vadd.f32 %v148, %v170
    %172 = vdwg.mxu0
    %v173 = vld [vmem:[%s4] sm:$0x1]
    %v175 = vperm.slane %v173, 0
    %v177 = vadd.f32 %v169, %v175
    %v178 = vadd.f32 %v171, %v175
    %v179 = vmax.f32 %v177, 0.0
    %v180 = vmax.f32 %v178, 0.0
    %v181 = vpack.c.bf16 %v179, %v179
    %v182 = vpack.c.bf16 %v180, %v180
    %v185 = vunpack.c.l.b16 %v181
    %v186 = vunpack.c.l.b16 %v182
    %v187 = vpack.c.b16 %v186, %v185
    %189 = vmatpush.bf16.msra.mxu0 0
    %190 = vmatpush.bf16.msra.mxu0 0
    %191 = vmatpush.bf16.msra.mxu0 0
    %192 = vmatpush.bf16.msra.mxu0 0
    %193 = vmatpush.bf16.msra.mxu0 0
    %194 = vmatpush.bf16.msra.mxu0 0
    %195 = vmatpush.bf16.msra.mxu0 0
    %196 = vmatpush.bf16.msra.mxu0 %v187
    %197 = vmatmul.bf16.gmra.mxu0 %v94
    %v198 = vpop.f32.mrf.mxu0
    %v199 = vadd.f32 0.0, %v198
    %v200 = vpop.f32.mrf.mxu0
    %v201 = vadd.f32 0.0, %v200
    %202 = vdwg.mxu0
    %v203 = vmul.f32 %v199, %v113
    %v204 = vmul.f32 %v201, %v118
    %v205 = vpack.c.bf16 %v203, %v203
    %v206 = vpack.c.bf16 %v204, %v204
    %v209 = vunpack.c.l.b16 %v205
    %v210 = vunpack.c.l.b16 %v206
    %v211 = vpack.c.b16 %v210, %v209
    %v213 = vld [vmem:[#allocation7] sm:$0xf]
    %v214 = vld [vmem:[#allocation7 + $0x4] sm:$0xf]
    %v215 = vld [vmem:[#allocation7 + $0x8] sm:$0xf]
    %v216 = vld [vmem:[#allocation7 + $0xc] sm:$0xf]
    %v217 = vld [vmem:[#allocation7 + $0x10] sm:$0xf]
    %v218 = vld [vmem:[#allocation7 + $0x14] sm:$0xf]
    %v219 = vld [vmem:[#allocation7 + $0x18] sm:$0xf]
    %v220 = vld [vmem:[#allocation7 + $0x1c] sm:$0xf]
    %v221 = vld [vmem:[#allocation7 + $0x20] sm:$0xf]
    %v222 = vld [vmem:[#allocation7 + $0x24] sm:$0xf]
    %v223 = vld [vmem:[#allocation7 + $0x28] sm:$0xf]
    %v224 = vld [vmem:[#allocation7 + $0x2c] sm:$0xf]
    %v225 = vld [vmem:[#allocation7 + $0x30] sm:$0xf]
    %v226 = vld [vmem:[#allocation7 + $0x34] sm:$0xf]
    %v227 = vld [vmem:[#allocation7 + $0x38] sm:$0xf]
    %v228 = vld [vmem:[#allocation7 + $0x3c] sm:$0xf]
    %v229 = vld [vmem:[#allocation7 + $0x40] sm:$0xf]
    %v230 = vld [vmem:[#allocation7 + $0x44] sm:$0xf]
    %v231 = vld [vmem:[#allocation7 + $0x48] sm:$0xf]
    %v232 = vld [vmem:[#allocation7 + $0x4c] sm:$0xf]
    %v233 = vld [vmem:[#allocation7 + $0x50] sm:$0xf]
    %v234 = vld [vmem:[#allocation7 + $0x54] sm:$0xf]
    %v235 = vld [vmem:[#allocation7 + $0x58] sm:$0xf]
    %v236 = vld [vmem:[#allocation7 + $0x5c] sm:$0xf]
    %v237 = vld [vmem:[#allocation7 + $0x60] sm:$0xf]
    %v238 = vld [vmem:[#allocation7 + $0x64] sm:$0xf]
    %v239 = vld [vmem:[#allocation7 + $0x68] sm:$0xf]
    %v240 = vld [vmem:[#allocation7 + $0x6c] sm:$0xf]
    %v241 = vld [vmem:[#allocation7 + $0x70] sm:$0xf]
    %v242 = vld [vmem:[#allocation7 + $0x74] sm:$0xf]
    %v243 = vld [vmem:[#allocation7 + $0x78] sm:$0xf]
    %v244 = vld [vmem:[#allocation7 + $0x7c] sm:$0xf]
    %v245 = vld [vmem:[%s6] sm:$0x1]
    %v247 = vperm.slane %v245, 0
    %v281 = vunpack.c.l.b16 %v213
    %v282 = vunpack.c.l.b16 %v214
    %v283 = vunpack.c.l.b16 %v215
    %v284 = vunpack.c.l.b16 %v216
    %v285 = vunpack.c.l.b16 %v217
    %v286 = vunpack.c.l.b16 %v218
    %v287 = vunpack.c.l.b16 %v219
    %v288 = vunpack.c.l.b16 %v220
    %v289 = vunpack.c.l.b16 %v221
    %v290 = vunpack.c.l.b16 %v222
    %v291 = vunpack.c.l.b16 %v223
    %v292 = vunpack.c.l.b16 %v224
    %v293 = vunpack.c.l.b16 %v225
    %v294 = vunpack.c.l.b16 %v226
    %v295 = vunpack.c.l.b16 %v227
    %v296 = vunpack.c.l.b16 %v228
    %v297 = vunpack.c.l.b16 %v229
    %v298 = vunpack.c.l.b16 %v230
    %v299 = vunpack.c.l.b16 %v231
    %v300 = vunpack.c.l.b16 %v232
    %v301 = vunpack.c.l.b16 %v233
    %v302 = vunpack.c.l.b16 %v234
    %v303 = vunpack.c.l.b16 %v235
    %v304 = vunpack.c.l.b16 %v236
    %v305 = vunpack.c.l.b16 %v237
    %v306 = vunpack.c.l.b16 %v238
    %v307 = vunpack.c.l.b16 %v239
    %v308 = vunpack.c.l.b16 %v240
    %v309 = vunpack.c.l.b16 %v241
    %v310 = vunpack.c.l.b16 %v242
    %v311 = vunpack.c.l.b16 %v243
    %v312 = vunpack.c.l.b16 %v244
    %v313 = vpack.c.b16 %v282, %v281
    %v314 = vpack.c.b16 %v284, %v283
    %v315 = vpack.c.b16 %v286, %v285
    %v316 = vpack.c.b16 %v288, %v287
    %v317 = vpack.c.b16 %v290, %v289
    %v318 = vpack.c.b16 %v292, %v291
    %v319 = vpack.c.b16 %v294, %v293
    %v320 = vpack.c.b16 %v296, %v295
    %v321 = vpack.c.b16 %v298, %v297
    %v322 = vpack.c.b16 %v300, %v299
    %v323 = vpack.c.b16 %v302, %v301
    %v324 = vpack.c.b16 %v304, %v303
    %v325 = vpack.c.b16 %v306, %v305
    %v326 = vpack.c.b16 %v308, %v307
    %v327 = vpack.c.b16 %v310, %v309
    %v328 = vpack.c.b16 %v312, %v311
    %345 = vmatpush.bf16.msra.mxu0 %v320
    %346 = vmatpush.bf16.msra.mxu0 %v319
    %347 = vmatpush.bf16.msra.mxu0 %v318
    %348 = vmatpush.bf16.msra.mxu0 %v317
    %349 = vmatpush.bf16.msra.mxu0 %v316
    %350 = vmatpush.bf16.msra.mxu0 %v315
    %351 = vmatpush.bf16.msra.mxu0 %v314
    %352 = vmatpush.bf16.msra.mxu0 %v313
    %353 = vmatmul.bf16.gmra.mxu0 %v187
    %v354 = vpop.f32.mrf.mxu0
    %v355 = vadd.f32 %v247, %v354
    %v356 = vpop.f32.mrf.mxu0
    %v357 = vadd.f32 %v247, %v356
    %358 = vdwg.mxu0
    %359 = vmatpush.bf16.msra.mxu0 %v328
    %360 = vmatpush.bf16.msra.mxu0 %v327
    %361 = vmatpush.bf16.msra.mxu0 %v326
    %362 = vmatpush.bf16.msra.mxu0 %v325
    %363 = vmatpush.bf16.msra.mxu0 %v324
    %364 = vmatpush.bf16.msra.mxu0 %v323
    %365 = vmatpush.bf16.msra.mxu0 %v322
    %366 = vmatpush.bf16.msra.mxu0 %v321
    %367 = vmatmul.bf16.gmra.mxu0 %v211
    %v368 = vpop.f32.mrf.mxu0
    %v369 = vadd.f32 %v355, %v368
    %v370 = vpop.f32.mrf.mxu0
    %v371 = vadd.f32 %v357, %v370
    %372 = vdwg.mxu0
    %373 = vst [vmem:[#allocation8] sm:$0xff] %v369
    %374 = vst [vmem:[#allocation8 + $0x8] sm:$0xff] %v371
    // Predicated region
    $region42: #{tpu_custom_call.1} parent=1 // pred_check
      _
    $region43: #{tpu_custom_call.1} parent=1 // pred_check_branch
      %376 = sbr.rel (0) target = $region45
    $region44: #{tpu_custom_call.1} parent=1 // pred_region
      %378 = vsyncadd [#allocation4], 0
      %s379 = sshll.u32 [#allocation8], 4
      %s380 = int_to_ptr.vmem [resolvable:$true] %s379
      %s381 = sshll.u32 %s7, 4
      %s382 = int_to_ptr.hbm [resolvable:$true] %s381
      %387 = dma.vmem_to_hbm [thread:$0]  %s380, 256, %s382, [#allocation4], 128, 128, 8
    $region45: #{tpu_custom_call.1} parent=1 // pred_fallthru
      _
    // Predicated region
    $region46: #{tpu_custom_call.1} parent=1 // pred_check
      _
    $region47: #{tpu_custom_call.1} parent=1 // pred_check_branch
      %389 = sbr.rel (0) target = $region49
    $region48: #{tpu_custom_call.1} parent=1 // pred_region
      %391 = dma.done [#allocation4], 256
    $region49: #{tpu_custom_call.1} parent=1 // pred_fallthru
      _
    %392 = vsyncpa [#allocation3], 1
    %393 = vsyncpa [#allocation6], 1
    %394 = vsyncpa [#allocation4], 1

</llo_original>
